<compile_context>
chip_gen: v7x
topology: tpu7x:2x2x1
jax: 0.10.0
libtpu: 0.0.40
codegen_flags: <defaults>
</compile_context>

<pallas_src>
import functools
from math import sqrt

import jax
import jax.numpy as jnp
from jax import lax
from jax.experimental import pallas as pl
from jax.experimental.pallas import tpu as pltpu


def _attention_jes_kernel(x_ref, w_ref, slab_ref, *,
                          inv_scale: float, use_lookahead_mask: bool,
                          d_attn: int, seq_len: int, block_b: int,
                          attn_operand_dtype):
    """One grid step == `block_b` batch elements, rows flattened.

    x_ref:    (block_b*S, D_in)        f32
    w_ref:    (D_in, 3*D_attn)         f32   (Wq | Wk | Wv fused)
    slab_ref: (block_b*S, 4*D_attn)    f32   ([Q | K | V | out] fused)
    """
    # Fused QKV projection: one wide MXU matmul over every row in the block
    # (M = block_b*S, N = 3*D_attn).  HIGHEST precision keeps the returned
    # Q/K/V bit-faithful to an f32 GEMM.
    qkv = jnp.dot(x_ref[...], w_ref[...],
                  preferred_element_type=jnp.float32,
                  precision=lax.Precision.HIGHEST)      # (rows, 3*D_attn)

    if use_lookahead_mask:
        # Single 2-D (S, S) mask, hoisted out of the batch loop; PyTorch
        # semantics: keep (0.0) when query_row >= key_col, else -inf.
        row = lax.broadcasted_iota(jnp.int32, (seq_len, seq_len), 0)
        col = lax.broadcasted_iota(jnp.int32, (seq_len, seq_len), 1)
        keep = row >= col

    outs = []
    for b in range(block_b):                  # static, small unrolled loop
        lo = b * seq_len
        hi = lo + seq_len
        q_b = qkv[lo:hi, 0:d_attn]            # (S, D_attn)
        k_b = qkv[lo:hi, d_attn:2 * d_attn]
        v_b = qkv[lo:hi, 2 * d_attn:3 * d_attn]

        # Scaled scores (Q/sqrt(dk)) @ K^T via last-dim contraction — MXU
        # native orientation, no materialized transpose.  dk = D_in, exactly
        # as in the PyTorch module.
        q_s = (q_b * inv_scale).astype(attn_operand_dtype)
        k_s = k_b.astype(attn_operand_dtype)
        scores = lax.dot_general(q_s, k_s, (((1,), (1,)), ((), ())),
                                 preferred_element_type=jnp.float32)  # (S, S)

        if use_lookahead_mask:
            scores = jnp.where(keep, scores, -jnp.inf)

        # Softmax over the key axis (dim=2 in PyTorch), exact division.
        m = jnp.max(scores, axis=-1, keepdims=True)
        e = jnp.exp(scores - m)
        s = jnp.sum(e, axis=-1, keepdims=True)
        probs = e / s

        out_b = jnp.dot(probs.astype(attn_operand_dtype),
                        v_b.astype(attn_operand_dtype),
                        preferred_element_type=jnp.float32)   # (S, D_attn)
        outs.append(out_b)

    out = outs[0] if block_b == 1 else jnp.concatenate(outs, axis=0)

    # Lane-dense store: qkv stays at its natural lane offsets (0..3*D_attn),
    # out appended at lanes 3*D_attn.. — one full-width unmasked vst.
    slab_ref[...] = jnp.concatenate([qkv, out], axis=-1).astype(slab_ref.dtype)


def _choose_block_b(B: int, S: int, target_rows: int = 256) -> int:
    """Pick the batch block size.

    The grid is a sequential loop on a single TensorCore (v5e/v6e), so small
    problems run as ONE step (block_b = B).  Larger problems pick the biggest
    divisor of B with block_b*S <= target_rows (~MXU row fill per step); the
    remaining grid steps are marked "parallel" for multi-TC chips (v7x).
    """
    if B * S <= target_rows:
        return B
    best = 1
    for d in range(1, B + 1):
        if B % d == 0 and d * S <= target_rows:
            best = d
    return best


def attention_jes(embedding_input: jax.Array,
                  wq: jax.Array, wk: jax.Array, wv: jax.Array,
                  use_lookahead_mask: bool,
                  *, block_b: int | None = None,
                  use_bf16_attn_matmuls: bool = False):
    """Pallas implementation of AttentionJES.forward.

    Args:
      embedding_input: (B, S, D_in) float32.
      wq, wk, wv:      (D_in, D_attn) float32 (pre-transposed Linear weights,
                        bias=False).
      use_lookahead_mask: static python bool.
      use_bf16_attn_matmuls: if True, the two attention matmuls use bf16
                        operands with f32 accumulation (faster MXU path on
                        larger shapes); Q/K/V projection stays f32.
    Returns:
      (output, (Q, K, V)) with output/Q/K/V of shape (B, S, D_attn).
    """
    B, S, D_in = embedding_input.shape
    D_attn = wq.shape[1]
    assert wk.shape == (D_in, D_attn) and wv.shape == (D_in, D_attn)

    # NOTE: scale uses sqrt(D_in) (input feature size), exactly like the
    # PyTorch module (dk = embedding_input.shape[-1]), not sqrt(D_attn).
    inv_scale = 1.0 / float(sqrt(D_in))

    if block_b is None:
        block_b = _choose_block_b(B, S)
    assert B % block_b == 0, "block_b must divide the batch size"
    grid_b = B // block_b
    rows = block_b * S

    # Flatten batch*seq in the wrapper so the kernel never reshapes.
    x2d = embedding_input.reshape(B * S, D_in)
    # Fuse the three projection weights into one wide matmul operand.
    w_qkv = jnp.concatenate([wq, wk, wv], axis=1)          # (D_in, 3*D_attn)

    attn_dtype = jnp.bfloat16 if use_bf16_attn_matmuls else jnp.float32

    kernel = functools.partial(
        _attention_jes_kernel,
        inv_scale=inv_scale,
        use_lookahead_mask=bool(use_lookahead_mask),
        d_attn=D_attn,
        seq_len=S,
        block_b=block_b,
        attn_operand_dtype=attn_dtype,
    )

    x_spec = pl.BlockSpec((rows, D_in), lambda b: (b, 0))
    w_spec = pl.BlockSpec((D_in, 3 * D_attn), lambda b: (0, 0))
    slab_spec = pl.BlockSpec((rows, 4 * D_attn), lambda b: (b, 0))

    # Scoped-VMEM budget from the actual block + intermediate sizes (double
    # buffering of x/w/slab, qkv + concat temp, per-batch score tensors),
    # with 2x headroom.  Clamped to fit v7x's 64 MiB physical VMEM.
    f32b = 4
    est = f32b * (2 * rows * D_in
                  + 2 * D_in * 3 * D_attn
                  + 2 * rows * 4 * D_attn
                  + rows * 3 * D_attn
                  + rows * 4 * D_attn
                  + block_b * (3 * S * S + S * D_attn))
    vmem_limit = int(min(max(2 * est + (4 << 20), 32 << 20), 56 << 20))

    slab = pl.pallas_call(
        kernel,
        out_shape=jax.ShapeDtypeStruct((B * S, 4 * D_attn), jnp.float32),
        grid_spec=pltpu.PrefetchScalarGridSpec(
            num_scalar_prefetch=0,
            grid=(grid_b,),
            in_specs=[x_spec, w_spec],
            out_specs=slab_spec,
        ),
        compiler_params=pltpu.CompilerParams(
            dimension_semantics=("parallel",),
            vmem_limit_bytes=vmem_limit),
    )(x2d, w_qkv)

    # Split the lane-dense [Q | K | V | out] slab back into the module's four
    # return tensors.  (If a downstream consumer can read the slab directly,
    # prefer that — unfused slices re-read/write the slab in HBM.)
    slab = slab.reshape(B, S, 4 * D_attn)
    q = slab[..., 0:D_attn]
    k = slab[..., D_attn:2 * D_attn]
    v = slab[..., 2 * D_attn:3 * D_attn]
    out = slab[..., 3 * D_attn:4 * D_attn]
    return out, (q, k, v)


def _reference(x, wq, wk, wv, use_mask):
    """Pure-JAX reference mirroring the PyTorch forward (dropout = identity)."""
    hp = lax.Precision.HIGHEST
    q = jnp.matmul(x, wq, precision=hp)
    k = jnp.matmul(x, wk, precision=hp)
    v = jnp.matmul(x, wv, precision=hp)
    scale = sqrt(x.shape[-1])
    scores = jnp.einsum("bsd,btd->bst", q, k, precision=hp) / scale
    if use_mask:
        S = scores.shape[1]
        row = jnp.arange(S)[:, None]
        col = jnp.arange(S)[None, :]
        mask = jnp.where(row >= col, 0.0, -jnp.inf)
        scores = scores + mask[None]
    probs = jax.nn.softmax(scores, axis=2)
    out = jnp.einsum("bst,btd->bsd", probs, v, precision=hp)
    return out, (q, k, v)


if __name__ == "__main__":
    # Small shapes consistent with the module: batch=2, seq=8,
    # input_size=32, attention_size=32.
    B, S, D_in, D_attn = 2, 8, 32, 32

    key = jax.random.PRNGKey(0)
    kx, kq, kk, kv = jax.random.split(key, 4)

    x = jax.random.normal(kx, (B, S, D_in), dtype=jnp.float32)

    # Deterministic Linear-style init: uniform(-1/sqrt(fan_in), 1/sqrt(fan_in)).
    bound = 1.0 / sqrt(D_in)
    wq = jax.random.uniform(kq, (D_in, D_attn), jnp.float32, -bound, bound)
    wk = jax.random.uniform(kk, (D_in, D_attn), jnp.float32, -bound, bound)
    wv = jax.random.uniform(kv, (D_in, D_attn), jnp.float32, -bound, bound)

    for use_mask in (True, False):
        out, (q, k, v) = attention_jes(x, wq, wk, wv, use_mask)
        jax.block_until_ready((out, q, k, v))

        out_ref, (q_ref, k_ref, v_ref) = _reference(x, wq, wk, wv, use_mask)
        # Q/K/V: exact f32 matmuls (HIGHEST precision) — tight parity.
        assert jnp.allclose(q, q_ref, atol=1e-5, rtol=1e-5)
        assert jnp.allclose(k, k_ref, atol=1e-5, rtol=1e-5)
        assert jnp.allclose(v, v_ref, atol=1e-5, rtol=1e-5)
        # Output: exact softmax division restores near-f32 parity.
        assert jnp.allclose(out, out_ref, atol=1e-4, rtol=1e-4)

    # Optional bf16-operand attention-matmul path (f32 accumulation).
    out_bf, (q_bf, k_bf, v_bf) = attention_jes(
        x, wq, wk, wv, True, use_bf16_attn_matmuls=True)
    jax.block_until_ready((out_bf, q_bf, k_bf, v_bf))
    out_ref, (q_ref, k_ref, v_ref) = _reference(x, wq, wk, wv, True)
    assert jnp.allclose(q_bf, q_ref, atol=1e-5, rtol=1e-5)   # projection stays f32
    assert jnp.allclose(out_bf, out_ref, atol=3e-2, rtol=3e-2)

    print("KERNEL_OK")
</pallas_src>

<mosaic_0001>
module attributes {stable_mosaic.version = 11 : i64} {
  func.func @_attention_jes_kernel(%arg0: i32, %arg1: memref<16x32xf32, #tpu.memory_space<vmem>>, %arg2: memref<32x96xf32, #tpu.memory_space<vmem>>, %arg3: memref<16x128xf32, #tpu.memory_space<vmem>>) attributes {dimension_semantics = [#tpu.dimension_semantics<parallel>], iteration_bounds = array<i64: 1>, scalar_prefetch = 0 : i64, scratch_operands = 0 : i64, tpu.core_type = #tpu.core_type<tc>, window_params = [{transform_indices = @transform_0, window_bounds = array<i64: 16, 32>}, {pipeline_mode = #tpu.pipeline_mode<synchronous>, transform_indices = @transform_1, window_bounds = array<i64: 32, 96>}, {transform_indices = @transform_2, window_bounds = array<i64: 16, 128>}]} {
    %c0 = arith.constant 0 : index
    %c0_0 = arith.constant 0 : index
    %0 = vector.load %arg1[%c0, %c0_0] : memref<16x32xf32, #tpu.memory_space<vmem>>, vector<16x32xf32>
    %c0_1 = arith.constant 0 : index
    %c0_2 = arith.constant 0 : index
    %1 = vector.load %arg2[%c0_1, %c0_2] : memref<32x96xf32, #tpu.memory_space<vmem>>, vector<32x96xf32>
    %cst = arith.constant dense<0.000000e+00> : vector<16x96xf32>
    %2 = tpu.matmul %0, %1, %cst {dimension_numbers = #tpu.dot_dimension_numbers<[1], [0], [0], [1], [0, 0, 1, 1], [], []>, precision = #tpu.contract_precision<fp32>} : vector<16x32xf32>, vector<32x96xf32>, vector<16x96xf32> -> vector<16x96xf32>
    %3 = tpu.iota {dimensions = array<i32: 0>} : vector<8x8xi32>
    %4 = tpu.iota {dimensions = array<i32: 1>} : vector<8x8xi32>
    %5 = arith.cmpi sge, %3, %4 : vector<8x8xi32>
    %6 = vector.extract_strided_slice %2 {offsets = [0, 0], sizes = [8, 32], strides = [1, 1]} : vector<16x96xf32> to vector<8x32xf32>
    %7 = vector.extract_strided_slice %2 {offsets = [0, 32], sizes = [8, 32], strides = [1, 1]} : vector<16x96xf32> to vector<8x32xf32>
    %8 = vector.extract_strided_slice %2 {offsets = [0, 64], sizes = [8, 32], strides = [1, 1]} : vector<16x96xf32> to vector<8x32xf32>
    %cst_3 = arith.constant 0.176776692 : f32
    %9 = vector.broadcast %cst_3 : f32 to vector<8x32xf32>
    %10 = arith.mulf %6, %9 : vector<8x32xf32>
    %cst_4 = arith.constant dense<0.000000e+00> : vector<8x8xf32>
    %11 = tpu.matmul %10, %7, %cst_4 {dimension_numbers = #tpu.dot_dimension_numbers<[1], [1], [0], [0], [0, 0, 1, 0], [], []>} : vector<8x32xf32>, vector<8x32xf32>, vector<8x8xf32> -> vector<8x8xf32>
    %cst_5 = arith.constant 0xFF800000 : f32
    %12 = vector.broadcast %cst_5 : f32 to vector<8x8xf32>
    %13 = arith.select %5, %11, %12 : vector<8x8xi1>, vector<8x8xf32>
    %cst_6 = arith.constant dense<0xFF800000> : vector<8xf32>
    %14 = vector.multi_reduction <maximumf>, %13, %cst_6 [1] : vector<8x8xf32> to vector<8xf32>
    %15 = vector.shape_cast %14 : vector<8xf32> to vector<8x1xf32>
    %16 = vector.broadcast %15 : vector<8x1xf32> to vector<8x8xf32>
    %17 = arith.subf %13, %16 : vector<8x8xf32>
    %18 = math.exp %17 : vector<8x8xf32>
    %cst_7 = arith.constant dense<0.000000e+00> : vector<8xf32>
    %19 = vector.multi_reduction <add>, %18, %cst_7 [1] : vector<8x8xf32> to vector<8xf32>
    %20 = vector.shape_cast %19 : vector<8xf32> to vector<8x1xf32>
    %21 = vector.broadcast %20 : vector<8x1xf32> to vector<8x8xf32>
    %22 = arith.divf %18, %21 : vector<8x8xf32>
    %cst_8 = arith.constant dense<0.000000e+00> : vector<8x32xf32>
    %23 = tpu.matmul %22, %8, %cst_8 {dimension_numbers = #tpu.dot_dimension_numbers<[1], [0], [0], [1], [0, 0, 1, 1], [], []>} : vector<8x8xf32>, vector<8x32xf32>, vector<8x32xf32> -> vector<8x32xf32>
    %24 = vector.extract_strided_slice %2 {offsets = [8, 0], sizes = [8, 32], strides = [1, 1]} : vector<16x96xf32> to vector<8x32xf32>
    %25 = vector.extract_strided_slice %2 {offsets = [8, 32], sizes = [8, 32], strides = [1, 1]} : vector<16x96xf32> to vector<8x32xf32>
    %26 = vector.extract_strided_slice %2 {offsets = [8, 64], sizes = [8, 32], strides = [1, 1]} : vector<16x96xf32> to vector<8x32xf32>
    %cst_9 = arith.constant 0.176776692 : f32
    %27 = vector.broadcast %cst_9 : f32 to vector<8x32xf32>
    %28 = arith.mulf %24, %27 : vector<8x32xf32>
    %cst_10 = arith.constant dense<0.000000e+00> : vector<8x8xf32>
    %29 = tpu.matmul %28, %25, %cst_10 {dimension_numbers = #tpu.dot_dimension_numbers<[1], [1], [0], [0], [0, 0, 1, 0], [], []>} : vector<8x32xf32>, vector<8x32xf32>, vector<8x8xf32> -> vector<8x8xf32>
    %cst_11 = arith.constant 0xFF800000 : f32
    %30 = vector.broadcast %cst_11 : f32 to vector<8x8xf32>
    %31 = arith.select %5, %29, %30 : vector<8x8xi1>, vector<8x8xf32>
    %cst_12 = arith.constant dense<0xFF800000> : vector<8xf32>
    %32 = vector.multi_reduction <maximumf>, %31, %cst_12 [1] : vector<8x8xf32> to vector<8xf32>
    %33 = vector.shape_cast %32 : vector<8xf32> to vector<8x1xf32>
    %34 = vector.broadcast %33 : vector<8x1xf32> to vector<8x8xf32>
    %35 = arith.subf %31, %34 : vector<8x8xf32>
    %36 = math.exp %35 : vector<8x8xf32>
    %cst_13 = arith.constant dense<0.000000e+00> : vector<8xf32>
    %37 = vector.multi_reduction <add>, %36, %cst_13 [1] : vector<8x8xf32> to vector<8xf32>
    %38 = vector.shape_cast %37 : vector<8xf32> to vector<8x1xf32>
    %39 = vector.broadcast %38 : vector<8x1xf32> to vector<8x8xf32>
    %40 = arith.divf %36, %39 : vector<8x8xf32>
    %cst_14 = arith.constant dense<0.000000e+00> : vector<8x32xf32>
    %41 = tpu.matmul %40, %26, %cst_14 {dimension_numbers = #tpu.dot_dimension_numbers<[1], [0], [0], [1], [0, 0, 1, 1], [], []>} : vector<8x8xf32>, vector<8x32xf32>, vector<8x32xf32> -> vector<8x32xf32>
    %42 = tpu.concatenate %23, %41 in 0 : vector<8x32xf32>, vector<8x32xf32> -> vector<16x32xf32>
    %43 = tpu.concatenate %2, %42 in 1 : vector<16x96xf32>, vector<16x32xf32> -> vector<16x128xf32>
    %c0_15 = arith.constant 0 : index
    %c0_16 = arith.constant 0 : index
    %44 = vector.load %arg3[%c0_15, %c0_16] : memref<16x128xf32, #tpu.memory_space<vmem>>, vector<16x128xf32>
    tpu.vector_store %arg3[%c0_15, %c0_16], %43 {strides = array<i32>} : memref<16x128xf32, #tpu.memory_space<vmem>>, vector<16x128xf32>,
    return
  }
  func.func @transform_0(%arg0: i32) -> (i32, i32) {
    %c0_i32 = arith.constant 0 : i32
    %c0_i32_0 = arith.constant 0 : i32
    return %arg0, %c0_i32 : i32, i32
  }
  func.func @transform_1(%arg0: i32) -> (i32, i32) {
    %c0_i32 = arith.constant 0 : i32
    %c0_i32_0 = arith.constant 0 : i32
    %c0_i32_1 = arith.constant 0 : i32
    return %c0_i32, %c0_i32_0 : i32, i32
  }
  func.func @transform_2(%arg0: i32) -> (i32, i32) {
    %c0_i32 = arith.constant 0 : i32
    %c0_i32_0 = arith.constant 0 : i32
    return %arg0, %c0_i32 : i32, i32
  }
}

</mosaic_0001>

<llo_original>
// kernel: tpu_custom_call.1
$region0: #{tpu_custom_call.1}
  #allocation0 [shape = 'u32[]', space=smem, size = 0x4, offset = 0x4, fixed_abs, tag = 'smem constant byte address 0x4 - core index']
  #allocation1 [shape = 'u32[144,128]{1,0:T(1,128)}', space=vmem, size = 0x12000, scoped, tag = 'internal scratch']
  %s0 = inlined_call_operand.hbm [shape: f32[16,32], index: 0, kind: input, shape index: {}]
  %s1 = inlined_call_operand.hbm [shape: f32[32,96], index: 1, kind: input, shape index: {}]
  %s2 = inlined_call_operand.hbm [shape: f32[16,128], index: 2, kind: output, shape index: {}]
  %s3 = sld [smem:[#allocation0]]
  $region26: #{tpu_custom_call.1} parent=0
    _
  %s5 = ssub.s32 1, %s3
  %s6 = scalar_select 0, %s5, %s3
  $region1: #{tpu_custom_call.1} parent=0
    #allocation2 [shape = 'u8[8192]{0}', space=vmem, size = 0x2000, scoped, tag = 'input window, operand 0, single buffered']
    #allocation3 [shape = 's32[1]{0}', space=sflag, size = 0x4, scoped, tag = 'scoped memory for tpu_custom_call.1']
    #allocation4 [shape = 's32[1]{0}', space=sflag, size = 0x4, scoped, tag = 'scoped memory for tpu_custom_call.1']
    #allocation5 [shape = 'u8[16384]{0}', space=vmem, size = 0x4000, scoped, tag = 'input window, operand 1, single buffered']
    #allocation6 [shape = 's32[1]{0}', space=sflag, size = 0x4, scoped, tag = 'scoped memory for tpu_custom_call.1']
    #allocation7 [shape = 'u8[8192]{0}', space=vmem, size = 0x2000, scoped, tag = 'output window, operand 0, single buffered']
    %7 = vsyncpa [#allocation3], 0
    %8 = vsyncpa [#allocation6], 0
    %9 = vsyncpa [#allocation4], 0
    // Predicated region
    $region2: #{tpu_custom_call.1} parent=1 // pred_check
      _
    $region3: #{tpu_custom_call.1} parent=1 // pred_check_branch
      %11 = sbr.rel (0) target = $region5
    $region4: #{tpu_custom_call.1} parent=1 // pred_region
      %s13 = ssub.s32 256, 256
      %14 = vsyncadd [#allocation3], %s13
      %s15 = sshll.u32 [#allocation2], 4
      %s16 = int_to_ptr.vmem [resolvable:$true] %s15
      %21 = dma.hbm_to_vmem [thread:$0]  %s0, 256, %s16, [#allocation3], 128, 128, 8
    $region5: #{tpu_custom_call.1} parent=1 // pred_fallthru
      _
    // Predicated region
    $region6: #{tpu_custom_call.1} parent=1 // pred_check
      _
    $region7: #{tpu_custom_call.1} parent=1 // pred_check_branch
      %23 = sbr.rel (0) target = $region9
    $region8: #{tpu_custom_call.1} parent=1 // pred_region
      %s25 = ssub.s32 512, 512
      %26 = vsyncadd [#allocation6], %s25
      %s27 = sshll.u32 [#allocation5], 4
      %s28 = int_to_ptr.vmem [resolvable:$true] %s27
      %33 = dma.hbm_to_vmem [thread:$0]  %s1, 512, %s28, [#allocation6], 128, 128, 8
    $region9: #{tpu_custom_call.1} parent=1 // pred_fallthru
      _
    // Predicated region
    $region10: #{tpu_custom_call.1} parent=1 // pred_check
      _
    $region11: #{tpu_custom_call.1} parent=1 // pred_check_branch
      %35 = sbr.rel (0) target = $region13
    $region12: #{tpu_custom_call.1} parent=1 // pred_region
      %36 = dma.done [#allocation3], 256
    $region13: #{tpu_custom_call.1} parent=1 // pred_fallthru
      _
    // Predicated region
    $region14: #{tpu_custom_call.1} parent=1 // pred_check
      _
    $region15: #{tpu_custom_call.1} parent=1 // pred_check_branch
      %38 = sbr.rel (0) target = $region17
    $region16: #{tpu_custom_call.1} parent=1 // pred_region
      %39 = dma.done [#allocation6], 512
    $region17: #{tpu_custom_call.1} parent=1 // pred_fallthru
      _
    %v40 = vld [vmem:[#allocation2] sm:$0xff]
    %v41 = vld [vmem:[#allocation2 + $0x8] sm:$0xff]
    %v42 = vld [vmem:[#allocation5] sm:$0xff]
    %v43 = vld [vmem:[#allocation5 + $0x8] sm:$0xff]
    %v44 = vld [vmem:[#allocation5 + $0x10] sm:$0xff]
    %v45 = vld [vmem:[#allocation5 + $0x18] sm:$0xff]
    %vm46 = vcmask 261120
    %v48 = vsel %vm46, %v40, 0
    %v51 = vsel %vm46, %v41, 0
    %53 = vmatprep.subr.mxu0 0.0
    %v54 = vand.u32 %v42, 4294901760
    %55 = vmatpush1.msra.mxu0 %v54
    %56 = vmatprep.subr.mxu0 0.0
    %v57 = vand.u32 %v43, 4294901760
    %58 = vmatpush1.msra.mxu0 %v57
    %59 = vmatprep.subr.mxu0 0.0
    %v60 = vand.u32 %v44, 4294901760
    %61 = vmatpush1.msra.mxu0 %v60
    %62 = vmatprep.subr.mxu0 0.0
    %v63 = vand.u32 %v45, 4294901760
    %64 = vmatpush1.msra.mxu0 %v63
    %65 = vmatprep.subr.mxu0 0.0
    %66 = vmatpush1.msra.mxu0 0.0
    %67 = vmatprep.subr.mxu0 0.0
    %68 = vmatpush1.msra.mxu0 0.0
    %69 = vmatprep.subr.mxu0 0.0
    %70 = vmatpush1.msra.mxu0 0.0
    %71 = vmatprep.subr.mxu0 0.0
    %72 = vmatpush1.msra.mxu0 0.0
    %73 = vmatprep.subr.mxu0 0.0
    %74 = vmatpush1.msra.mxu0 0.0
    %75 = vmatprep.subr.mxu0 0.0
    %76 = vmatpush1.msra.mxu0 0.0
    %77 = vmatprep.subr.mxu0 0.0
    %78 = vmatpush1.msra.mxu0 0.0
    %79 = vmatprep.subr.mxu0 0.0
    %80 = vmatpush1.msra.mxu0 0.0
    %81 = vmatprep.subr.mxu0 0.0
    %82 = vmatpush1.msra.mxu0 0.0
    %83 = vmatprep.subr.mxu0 0.0
    %84 = vmatpush1.msra.mxu0 0.0
    %85 = vmatprep.subr.mxu0 0.0
    %86 = vmatpush1.msra.mxu0 0.0
    %87 = vmatprep.subr.mxu0 0.0
    %88 = vmatpush1.msra.mxu0 0.0
    %89 = vmatprep.subr.mxu0 0.0
    %90 = vmatpush1.msra.mxu0 0.0
    %91 = vmatprep.subr.mxu0 0.0
    %92 = vmatpush1.msra.mxu0 0.0
    %93 = vmatprep.subr.mxu0 0.0
    %94 = vmatpush1.msra.mxu0 0.0
    %95 = vmatprep.subr.mxu0 0.0
    %96 = vmatpush1.msra.mxu0 0.0
    %97 = vmatprep.subr.mxu0 0.0
    %98 = vmatpush1.msra.mxu0 0.0
    %99 = vmatprep.subr.mxu0 0.0
    %100 = vmatpush1.msra.mxu0 0.0
    %101 = vmatprep.subr.mxu0 0.0
    %102 = vmatpush1.msra.mxu0 0.0
    %103 = vmatprep.subr.mxu0 0.0
    %104 = vmatpush1.msra.mxu0 0.0
    %105 = vmatprep.subr.mxu0 0.0
    %106 = vmatpush1.msra.mxu0 0.0
    %107 = vmatprep.subr.mxu0 0.0
    %108 = vmatpush1.msra.mxu0 0.0
    %109 = vmatprep.subr.mxu0 0.0
    %110 = vmatpush1.msra.mxu0 0.0
    %111 = vmatprep.subr.mxu0 0.0
    %112 = vmatpush1.msra.mxu0 0.0
    %113 = vmatprep.subr.mxu0 0.0
    %114 = vmatpush1.msra.mxu0 0.0
    %115 = vmatprep.subr.mxu0 0.0
    %116 = vmatpush1.msra.mxu0 0.0
    %117 = vmatprep.subr.mxu0 0.0
    %118 = vmatpush1.msra.mxu0 0.0
    %119 = vmatprep.subr.mxu0 0.0
    %120 = vmatpush1.msra.mxu0 0.0
    %121 = vmatprep.mubr.f32.mxu0 0.0
    %v122 = vand.u32 %v48, 4294901760
    %v123 = vsub.f32 %v48, %v122
    %v124 = vand.u32 %v123, 4294901760
    %v125 = vsub.f32 %v123, %v124
    %v126 = vand.u32 %v125, 4294901760
    %127 = vmatmul.mubr.f32.gmra.mrb[0].mxu0 %v126
    %v128 = vpop.f32.mrb[0].mxu0
    %v129 = vadd.f32 0.0, %v128
    %v130 = vpop.f32.mrb[0].mxu0
    %131 = vmatprep.mubr.f32.mxu0 0.0
    %v132 = vand.u32 %v51, 4294901760
    %v133 = vsub.f32 %v51, %v132
    %v134 = vand.u32 %v133, 4294901760
    %v135 = vsub.f32 %v133, %v134
    %v136 = vand.u32 %v135, 4294901760
    %137 = vmatmul.mubr.f32.gmra.mrb[0].mxu0 %v136
    %v138 = vpop.f32.mrb[0].mxu0
    %v139 = vadd.f32 0.0, %v138
    %v140 = vpop.f32.mrb[0].mxu0
    %141 = vdwg.mxu0
    %142 = vmatprep.subr.mxu0 0.0
    %v143 = vand.u32 %v42, 4294901760
    %v144 = vsub.f32 %v42, %v143
    %v145 = vand.u32 %v144, 4294901760
    %v146 = vsub.f32 %v144, %v145
    %v147 = vand.u32 %v146, 4294901760
    %148 = vmatpush1.msra.mxu0 %v147
    %149 = vmatprep.subr.mxu0 0.0
    %v150 = vand.u32 %v43, 4294901760
    %v151 = vsub.f32 %v43, %v150
    %v152 = vand.u32 %v151, 4294901760
    %v153 = vsub.f32 %v151, %v152
    %v154 = vand.u32 %v153, 4294901760
    %155 = vmatpush1.msra.mxu0 %v154
    %156 = vmatprep.subr.mxu0 0.0
    %v157 = vand.u32 %v44, 4294901760
    %v158 = vsub.f32 %v44, %v157
    %v159 = vand.u32 %v158, 4294901760
    %v160 = vsub.f32 %v158, %v159
    %v161 = vand.u32 %v160, 4294901760
    %162 = vmatpush1.msra.mxu0 %v161
    %163 = vmatprep.subr.mxu0 0.0
    %v164 = vand.u32 %v45, 4294901760
    %v165 = vsub.f32 %v45, %v164
    %v166 = vand.u32 %v165, 4294901760
    %v167 = vsub.f32 %v165, %v166
    %v168 = vand.u32 %v167, 4294901760
    %169 = vmatpush1.msra.mxu0 %v168
    %170 = vmatprep.subr.mxu0 0.0
    %171 = vmatpush1.msra.mxu0 0.0
    %172 = vmatprep.subr.mxu0 0.0
    %173 = vmatpush1.msra.mxu0 0.0
    %174 = vmatprep.subr.mxu0 0.0
    %175 = vmatpush1.msra.mxu0 0.0
    %176 = vmatprep.subr.mxu0 0.0
    %177 = vmatpush1.msra.mxu0 0.0
    %178 = vmatprep.subr.mxu0 0.0
    %179 = vmatpush1.msra.mxu0 0.0
    %180 = vmatprep.subr.mxu0 0.0
    %181 = vmatpush1.msra.mxu0 0.0
    %182 = vmatprep.subr.mxu0 0.0
    %183 = vmatpush1.msra.mxu0 0.0
    %184 = vmatprep.subr.mxu0 0.0
    %185 = vmatpush1.msra.mxu0 0.0
    %186 = vmatprep.subr.mxu0 0.0
    %187 = vmatpush1.msra.mxu0 0.0
    %188 = vmatprep.subr.mxu0 0.0
    %189 = vmatpush1.msra.mxu0 0.0
    %190 = vmatprep.subr.mxu0 0.0
    %191 = vmatpush1.msra.mxu0 0.0
    %192 = vmatprep.subr.mxu0 0.0
    %193 = vmatpush1.msra.mxu0 0.0
    %194 = vmatprep.subr.mxu0 0.0
    %195 = vmatpush1.msra.mxu0 0.0
    %196 = vmatprep.subr.mxu0 0.0
    %197 = vmatpush1.msra.mxu0 0.0
    %198 = vmatprep.subr.mxu0 0.0
    %199 = vmatpush1.msra.mxu0 0.0
    %200 = vmatprep.subr.mxu0 0.0
    %201 = vmatpush1.msra.mxu0 0.0
    %202 = vmatprep.subr.mxu0 0.0
    %203 = vmatpush1.msra.mxu0 0.0
    %204 = vmatprep.subr.mxu0 0.0
    %205 = vmatpush1.msra.mxu0 0.0
    %206 = vmatprep.subr.mxu0 0.0
    %207 = vmatpush1.msra.mxu0 0.0
    %208 = vmatprep.subr.mxu0 0.0
    %209 = vmatpush1.msra.mxu0 0.0
    %210 = vmatprep.subr.mxu0 0.0
    %211 = vmatpush1.msra.mxu0 0.0
    %212 = vmatprep.subr.mxu0 0.0
    %213 = vmatpush1.msra.mxu0 0.0
    %214 = vmatprep.subr.mxu0 0.0
    %215 = vmatpush1.msra.mxu0 0.0
    %216 = vmatprep.subr.mxu0 0.0
    %217 = vmatpush1.msra.mxu0 0.0
    %218 = vmatprep.subr.mxu0 0.0
    %219 = vmatpush1.msra.mxu0 0.0
    %220 = vmatprep.subr.mxu0 0.0
    %221 = vmatpush1.msra.mxu0 0.0
    %222 = vmatprep.subr.mxu0 0.0
    %223 = vmatpush1.msra.mxu0 0.0
    %224 = vmatprep.subr.mxu0 0.0
    %225 = vmatpush1.msra.mxu0 0.0
    %226 = vmatprep.mubr.f32.mxu0 0.0
    %v227 = vand.u32 %v48, 4294901760
    %228 = vmatmul.mubr.f32.gmra.mrb[0].mxu0 %v227
    %v229 = vpop.f32.mrb[0].mxu0
    %v230 = vadd.f32 %v129, %v229
    %v231 = vpop.f32.mrb[0].mxu0
    %232 = vmatprep.mubr.f32.mxu0 0.0
    %v233 = vand.u32 %v51, 4294901760
    %234 = vmatmul.mubr.f32.gmra.mrb[0].mxu0 %v233
    %v235 = vpop.f32.mrb[0].mxu0
    %v236 = vadd.f32 %v139, %v235
    %v237 = vpop.f32.mrb[0].mxu0
    %238 = vdwg.mxu0
    %239 = vmatprep.subr.mxu0 0.0
    %v240 = vand.u32 %v42, 4294901760
    %v241 = vsub.f32 %v42, %v240
    %242 = vmatpush1.msra.mxu0 %v241
    %243 = vmatprep.subr.mxu0 0.0
    %v244 = vand.u32 %v43, 4294901760
    %v245 = vsub.f32 %v43, %v244
    %246 = vmatpush1.msra.mxu0 %v245
    %247 = vmatprep.subr.mxu0 0.0
    %v248 = vand.u32 %v44, 4294901760
    %v249 = vsub.f32 %v44, %v248
    %250 = vmatpush1.msra.mxu0 %v249
    %251 = vmatprep.subr.mxu0 0.0
    %v252 = vand.u32 %v45, 4294901760
    %v253 = vsub.f32 %v45, %v252
    %254 = vmatpush1.msra.mxu0 %v253
    %255 = vmatprep.subr.mxu0 0.0
    %256 = vmatpush1.msra.mxu0 0.0
    %257 = vmatprep.subr.mxu0 0.0
    %258 = vmatpush1.msra.mxu0 0.0
    %259 = vmatprep.subr.mxu0 0.0
    %260 = vmatpush1.msra.mxu0 0.0
    %261 = vmatprep.subr.mxu0 0.0
    %262 = vmatpush1.msra.mxu0 0.0
    %263 = vmatprep.subr.mxu0 0.0
    %264 = vmatpush1.msra.mxu0 0.0
    %265 = vmatprep.subr.mxu0 0.0
    %266 = vmatpush1.msra.mxu0 0.0
    %267 = vmatprep.subr.mxu0 0.0
    %268 = vmatpush1.msra.mxu0 0.0
    %269 = vmatprep.subr.mxu0 0.0
    %270 = vmatpush1.msra.mxu0 0.0
    %271 = vmatprep.subr.mxu0 0.0
    %272 = vmatpush1.msra.mxu0 0.0
    %273 = vmatprep.subr.mxu0 0.0
    %274 = vmatpush1.msra.mxu0 0.0
    %275 = vmatprep.subr.mxu0 0.0
    %276 = vmatpush1.msra.mxu0 0.0
    %277 = vmatprep.subr.mxu0 0.0
    %278 = vmatpush1.msra.mxu0 0.0
    %279 = vmatprep.subr.mxu0 0.0
    %280 = vmatpush1.msra.mxu0 0.0
    %281 = vmatprep.subr.mxu0 0.0
    %282 = vmatpush1.msra.mxu0 0.0
    %283 = vmatprep.subr.mxu0 0.0
    %284 = vmatpush1.msra.mxu0 0.0
    %285 = vmatprep.subr.mxu0 0.0
    %286 = vmatpush1.msra.mxu0 0.0
    %287 = vmatprep.subr.mxu0 0.0
    %288 = vmatpush1.msra.mxu0 0.0
    %289 = vmatprep.subr.mxu0 0.0
    %290 = vmatpush1.msra.mxu0 0.0
    %291 = vmatprep.subr.mxu0 0.0
    %292 = vmatpush1.msra.mxu0 0.0
    %293 = vmatprep.subr.mxu0 0.0
    %294 = vmatpush1.msra.mxu0 0.0
    %295 = vmatprep.subr.mxu0 0.0
    %296 = vmatpush1.msra.mxu0 0.0
    %297 = vmatprep.subr.mxu0 0.0
    %298 = vmatpush1.msra.mxu0 0.0
    %299 = vmatprep.subr.mxu0 0.0
    %300 = vmatpush1.msra.mxu0 0.0
    %301 = vmatprep.subr.mxu0 0.0
    %302 = vmatpush1.msra.mxu0 0.0
    %303 = vmatprep.subr.mxu0 0.0
    %304 = vmatpush1.msra.mxu0 0.0
    %305 = vmatprep.subr.mxu0 0.0
    %306 = vmatpush1.msra.mxu0 0.0
    %307 = vmatprep.subr.mxu0 0.0
    %308 = vmatpush1.msra.mxu0 0.0
    %309 = vmatprep.subr.mxu0 0.0
    %310 = vmatpush1.msra.mxu0 0.0
    %311 = vmatprep.mubr.f32.mxu0 0.0
    %v312 = vand.u32 %v48, 4294901760
    %v313 = vsub.f32 %v48, %v312
    %314 = vmatmul.mubr.f32.gmra.mrb[0].mxu0 %v313
    %v315 = vpop.f32.mrb[0].mxu0
    %v316 = vadd.f32 %v230, %v315
    %v317 = vpop.f32.mrb[0].mxu0
    %318 = vmatprep.mubr.f32.mxu0 0.0
    %v319 = vand.u32 %v51, 4294901760
    %v320 = vsub.f32 %v51, %v319
    %321 = vmatmul.mubr.f32.gmra.mrb[0].mxu0 %v320
    %v322 = vpop.f32.mrb[0].mxu0
    %v323 = vadd.f32 %v236, %v322
    %v324 = vpop.f32.mrb[0].mxu0
    %325 = vdwg.mxu0
    %326 = vmatprep.subr.mxu0 0.0
    %v327 = vand.u32 %v42, 4294901760
    %328 = vmatpush1.msra.mxu0 %v327
    %329 = vmatprep.subr.mxu0 0.0
    %v330 = vand.u32 %v43, 4294901760
    %331 = vmatpush1.msra.mxu0 %v330
    %332 = vmatprep.subr.mxu0 0.0
    %v333 = vand.u32 %v44, 4294901760
    %334 = vmatpush1.msra.mxu0 %v333
    %335 = vmatprep.subr.mxu0 0.0
    %v336 = vand.u32 %v45, 4294901760
    %337 = vmatpush1.msra.mxu0 %v336
    %338 = vmatprep.subr.mxu0 0.0
    %339 = vmatpush1.msra.mxu0 0.0
    %340 = vmatprep.subr.mxu0 0.0
    %341 = vmatpush1.msra.mxu0 0.0
    %342 = vmatprep.subr.mxu0 0.0
    %343 = vmatpush1.msra.mxu0 0.0
    %344 = vmatprep.subr.mxu0 0.0
    %345 = vmatpush1.msra.mxu0 0.0
    %346 = vmatprep.subr.mxu0 0.0
    %347 = vmatpush1.msra.mxu0 0.0
    %348 = vmatprep.subr.mxu0 0.0
    %349 = vmatpush1.msra.mxu0 0.0
    %350 = vmatprep.subr.mxu0 0.0
    %351 = vmatpush1.msra.mxu0 0.0
    %352 = vmatprep.subr.mxu0 0.0
    %353 = vmatpush1.msra.mxu0 0.0
    %354 = vmatprep.subr.mxu0 0.0
    %355 = vmatpush1.msra.mxu0 0.0
    %356 = vmatprep.subr.mxu0 0.0
    %357 = vmatpush1.msra.mxu0 0.0
    %358 = vmatprep.subr.mxu0 0.0
    %359 = vmatpush1.msra.mxu0 0.0
    %360 = vmatprep.subr.mxu0 0.0
    %361 = vmatpush1.msra.mxu0 0.0
    %362 = vmatprep.subr.mxu0 0.0
    %363 = vmatpush1.msra.mxu0 0.0
    %364 = vmatprep.subr.mxu0 0.0
    %365 = vmatpush1.msra.mxu0 0.0
    %366 = vmatprep.subr.mxu0 0.0
    %367 = vmatpush1.msra.mxu0 0.0
    %368 = vmatprep.subr.mxu0 0.0
    %369 = vmatpush1.msra.mxu0 0.0
    %370 = vmatprep.subr.mxu0 0.0
    %371 = vmatpush1.msra.mxu0 0.0
    %372 = vmatprep.subr.mxu0 0.0
    %373 = vmatpush1.msra.mxu0 0.0
    %374 = vmatprep.subr.mxu0 0.0
    %375 = vmatpush1.msra.mxu0 0.0
    %376 = vmatprep.subr.mxu0 0.0
    %377 = vmatpush1.msra.mxu0 0.0
    %378 = vmatprep.subr.mxu0 0.0
    %379 = vmatpush1.msra.mxu0 0.0
    %380 = vmatprep.subr.mxu0 0.0
    %381 = vmatpush1.msra.mxu0 0.0
    %382 = vmatprep.subr.mxu0 0.0
    %383 = vmatpush1.msra.mxu0 0.0
    %384 = vmatprep.subr.mxu0 0.0
    %385 = vmatpush1.msra.mxu0 0.0
    %386 = vmatprep.subr.mxu0 0.0
    %387 = vmatpush1.msra.mxu0 0.0
    %388 = vmatprep.subr.mxu0 0.0
    %389 = vmatpush1.msra.mxu0 0.0
    %390 = vmatprep.subr.mxu0 0.0
    %391 = vmatpush1.msra.mxu0 0.0
    %392 = vmatprep.subr.mxu0 0.0
    %393 = vmatpush1.msra.mxu0 0.0
    %394 = vmatprep.mubr.f32.mxu0 0.0
    %v395 = vand.u32 %v48, 4294901760
    %v396 = vsub.f32 %v48, %v395
    %v397 = vand.u32 %v396, 4294901760
    %398 = vmatmul.mubr.f32.gmra.mrb[0].mxu0 %v397
    %v399 = vpop.f32.mrb[0].mxu0
    %v400 = vadd.f32 %v316, %v399
    %v401 = vpop.f32.mrb[0].mxu0
    %402 = vmatprep.mubr.f32.mxu0 0.0
    %v403 = vand.u32 %v51, 4294901760
    %v404 = vsub.f32 %v51, %v403
    %v405 = vand.u32 %v404, 4294901760
    %406 = vmatmul.mubr.f32.gmra.mrb[0].mxu0 %v405
    %v407 = vpop.f32.mrb[0].mxu0
    %v408 = vadd.f32 %v323, %v407
    %v409 = vpop.f32.mrb[0].mxu0
    %410 = vdwg.mxu0
    %411 = vmatprep.subr.mxu0 0.0
    %v412 = vand.u32 %v42, 4294901760
    %v413 = vsub.f32 %v42, %v412
    %v414 = vand.u32 %v413, 4294901760
    %415 = vmatpush1.msra.mxu0 %v414
    %416 = vmatprep.subr.mxu0 0.0
    %v417 = vand.u32 %v43, 4294901760
    %v418 = vsub.f32 %v43, %v417
    %v419 = vand.u32 %v418, 4294901760
    %420 = vmatpush1.msra.mxu0 %v419
    %421 = vmatprep.subr.mxu0 0.0
    %v422 = vand.u32 %v44, 4294901760
    %v423 = vsub.f32 %v44, %v422
    %v424 = vand.u32 %v423, 4294901760
    %425 = vmatpush1.msra.mxu0 %v424
    %426 = vmatprep.subr.mxu0 0.0
    %v427 = vand.u32 %v45, 4294901760
    %v428 = vsub.f32 %v45, %v427
    %v429 = vand.u32 %v428, 4294901760
    %430 = vmatpush1.msra.mxu0 %v429
    %431 = vmatprep.subr.mxu0 0.0
    %432 = vmatpush1.msra.mxu0 0.0
    %433 = vmatprep.subr.mxu0 0.0
    %434 = vmatpush1.msra.mxu0 0.0
    %435 = vmatprep.subr.mxu0 0.0
    %436 = vmatpush1.msra.mxu0 0.0
    %437 = vmatprep.subr.mxu0 0.0
    %438 = vmatpush1.msra.mxu0 0.0
    %439 = vmatprep.subr.mxu0 0.0
    %440 = vmatpush1.msra.mxu0 0.0
    %441 = vmatprep.subr.mxu0 0.0
    %442 = vmatpush1.msra.mxu0 0.0
    %443 = vmatprep.subr.mxu0 0.0
    %444 = vmatpush1.msra.mxu0 0.0
    %445 = vmatprep.subr.mxu0 0.0
    %446 = vmatpush1.msra.mxu0 0.0
    %447 = vmatprep.subr.mxu0 0.0
    %448 = vmatpush1.msra.mxu0 0.0
    %449 = vmatprep.subr.mxu0 0.0
    %450 = vmatpush1.msra.mxu0 0.0
    %451 = vmatprep.subr.mxu0 0.0
    %452 = vmatpush1.msra.mxu0 0.0
    %453 = vmatprep.subr.mxu0 0.0
    %454 = vmatpush1.msra.mxu0 0.0
    %455 = vmatprep.subr.mxu0 0.0
    %456 = vmatpush1.msra.mxu0 0.0
    %457 = vmatprep.subr.mxu0 0.0
    %458 = vmatpush1.msra.mxu0 0.0
    %459 = vmatprep.subr.mxu0 0.0
    %460 = vmatpush1.msra.mxu0 0.0
    %461 = vmatprep.subr.mxu0 0.0
    %462 = vmatpush1.msra.mxu0 0.0
    %463 = vmatprep.subr.mxu0 0.0
    %464 = vmatpush1.msra.mxu0 0.0
    %465 = vmatprep.subr.mxu0 0.0
    %466 = vmatpush1.msra.mxu0 0.0
    %467 = vmatprep.subr.mxu0 0.0
    %468 = vmatpush1.msra.mxu0 0.0
    %469 = vmatprep.subr.mxu0 0.0
    %470 = vmatpush1.msra.mxu0 0.0
    %471 = vmatprep.subr.mxu0 0.0
    %472 = vmatpush1.msra.mxu0 0.0
    %473 = vmatprep.subr.mxu0 0.0
    %474 = vmatpush1.msra.mxu0 0.0
    %475 = vmatprep.subr.mxu0 0.0
    %476 = vmatpush1.msra.mxu0 0.0
    %477 = vmatprep.subr.mxu0 0.0
    %478 = vmatpush1.msra.mxu0 0.0
    %479 = vmatprep.subr.mxu0 0.0
    %480 = vmatpush1.msra.mxu0 0.0
    %481 = vmatprep.subr.mxu0 0.0
    %482 = vmatpush1.msra.mxu0 0.0
    %483 = vmatprep.subr.mxu0 0.0
    %484 = vmatpush1.msra.mxu0 0.0
    %485 = vmatprep.subr.mxu0 0.0
    %486 = vmatpush1.msra.mxu0 0.0
    %487 = vmatprep.mubr.f32.mxu0 0.0
    %v488 = vand.u32 %v48, 4294901760
    %489 = vmatmul.mubr.f32.gmra.mrb[0].mxu0 %v488
    %v490 = vpop.f32.mrb[0].mxu0
    %v491 = vadd.f32 %v400, %v490
    %v492 = vpop.f32.mrb[0].mxu0
    %493 = vmatprep.mubr.f32.mxu0 0.0
    %v494 = vand.u32 %v51, 4294901760
    %495 = vmatmul.mubr.f32.gmra.mrb[0].mxu0 %v494
    %v496 = vpop.f32.mrb[0].mxu0
    %v497 = vadd.f32 %v408, %v496
    %v498 = vpop.f32.mrb[0].mxu0
    %499 = vdwg.mxu0
    %500 = vmatprep.subr.mxu0 0.0
    %v501 = vand.u32 %v42, 4294901760
    %502 = vmatpush1.msra.mxu0 %v501
    %503 = vmatprep.subr.mxu0 0.0
    %v504 = vand.u32 %v43, 4294901760
    %505 = vmatpush1.msra.mxu0 %v504
    %506 = vmatprep.subr.mxu0 0.0
    %v507 = vand.u32 %v44, 4294901760
    %508 = vmatpush1.msra.mxu0 %v507
    %509 = vmatprep.subr.mxu0 0.0
    %v510 = vand.u32 %v45, 4294901760
    %511 = vmatpush1.msra.mxu0 %v510
    %512 = vmatprep.subr.mxu0 0.0
    %513 = vmatpush1.msra.mxu0 0.0
    %514 = vmatprep.subr.mxu0 0.0
    %515 = vmatpush1.msra.mxu0 0.0
    %516 = vmatprep.subr.mxu0 0.0
    %517 = vmatpush1.msra.mxu0 0.0
    %518 = vmatprep.subr.mxu0 0.0
    %519 = vmatpush1.msra.mxu0 0.0
    %520 = vmatprep.subr.mxu0 0.0
    %521 = vmatpush1.msra.mxu0 0.0
    %522 = vmatprep.subr.mxu0 0.0
    %523 = vmatpush1.msra.mxu0 0.0
    %524 = vmatprep.subr.mxu0 0.0
    %525 = vmatpush1.msra.mxu0 0.0
    %526 = vmatprep.subr.mxu0 0.0
    %527 = vmatpush1.msra.mxu0 0.0
    %528 = vmatprep.subr.mxu0 0.0
    %529 = vmatpush1.msra.mxu0 0.0
    %530 = vmatprep.subr.mxu0 0.0
    %531 = vmatpush1.msra.mxu0 0.0
    %532 = vmatprep.subr.mxu0 0.0
    %533 = vmatpush1.msra.mxu0 0.0
    %534 = vmatprep.subr.mxu0 0.0
    %535 = vmatpush1.msra.mxu0 0.0
    %536 = vmatprep.subr.mxu0 0.0
    %537 = vmatpush1.msra.mxu0 0.0
    %538 = vmatprep.subr.mxu0 0.0
    %539 = vmatpush1.msra.mxu0 0.0
    %540 = vmatprep.subr.mxu0 0.0
    %541 = vmatpush1.msra.mxu0 0.0
    %542 = vmatprep.subr.mxu0 0.0
    %543 = vmatpush1.msra.mxu0 0.0
    %544 = vmatprep.subr.mxu0 0.0
    %545 = vmatpush1.msra.mxu0 0.0
    %546 = vmatprep.subr.mxu0 0.0
    %547 = vmatpush1.msra.mxu0 0.0
    %548 = vmatprep.subr.mxu0 0.0
    %549 = vmatpush1.msra.mxu0 0.0
    %550 = vmatprep.subr.mxu0 0.0
    %551 = vmatpush1.msra.mxu0 0.0
    %552 = vmatprep.subr.mxu0 0.0
    %553 = vmatpush1.msra.mxu0 0.0
    %554 = vmatprep.subr.mxu0 0.0
    %555 = vmatpush1.msra.mxu0 0.0
    %556 = vmatprep.subr.mxu0 0.0
    %557 = vmatpush1.msra.mxu0 0.0
    %558 = vmatprep.subr.mxu0 0.0
    %559 = vmatpush1.msra.mxu0 0.0
    %560 = vmatprep.subr.mxu0 0.0
    %561 = vmatpush1.msra.mxu0 0.0
    %562 = vmatprep.subr.mxu0 0.0
    %563 = vmatpush1.msra.mxu0 0.0
    %564 = vmatprep.subr.mxu0 0.0
    %565 = vmatpush1.msra.mxu0 0.0
    %566 = vmatprep.subr.mxu0 0.0
    %567 = vmatpush1.msra.mxu0 0.0
    %568 = vmatprep.mubr.f32.mxu0 0.0
    %v569 = vand.u32 %v48, 4294901760
    %570 = vmatmul.mubr.f32.gmra.mrb[0].mxu0 %v569
    %v571 = vpop.f32.mrb[0].mxu0
    %v572 = vadd.f32 %v491, %v571
    %v573 = vpop.f32.mrb[0].mxu0
    %574 = vmatprep.mubr.f32.mxu0 0.0
    %v575 = vand.u32 %v51, 4294901760
    %576 = vmatmul.mubr.f32.gmra.mrb[0].mxu0 %v575
    %v577 = vpop.f32.mrb[0].mxu0
    %v578 = vadd.f32 %v497, %v577
    %v579 = vpop.f32.mrb[0].mxu0
    %580 = vdwg.mxu0
    %v581 = vlaneseq
    %v582 = vshrl.u32 %v581, 7
    %v583 = vlaneseq
    %v584 = vand.u32 %v583, 127
    %vm585 = vcmp.ge.s32.totalorder %v582, %v584
    %v586 = vmul.f32 %v572, 0.17677669
    %588 = vrot.lane.b32.xlu0 %v572, 96
    %v589 = vpop.permute.xlu0 %588
    %v591 = vsel %vm46, %v586, 0
    %v593 = vsel %vm46, %v589, 0
    %595 = vmatprep.subr.mxu0 0.0
    %596 = vmatpush1.xpose.msra.mxu0 %v593
    %597 = vmatprep.subr.mxu0 0.0
    %598 = vmatpush1.xpose.msra.mxu0 0.0
    %599 = vmatprep.subr.mxu0 0.0
    %600 = vmatpush1.xpose.msra.mxu0 0.0
    %601 = vmatprep.subr.mxu0 0.0
    %602 = vmatpush1.xpose.msra.mxu0 0.0
    %603 = vmatprep.subr.mxu0 0.0
    %604 = vmatpush1.xpose.msra.mxu0 0.0
    %605 = vmatprep.subr.mxu0 0.0
    %606 = vmatpush1.xpose.msra.mxu0 0.0
    %607 = vmatprep.subr.mxu0 0.0
    %608 = vmatpush1.xpose.msra.mxu0 0.0
    %609 = vmatprep.subr.mxu0 0.0
    %610 = vmatpush1.xpose.msra.mxu0 0.0
    %611 = vmatprep.subr.mxu0 0.0
    %612 = vmatpush1.xpose.msra.mxu0 0.0
    %613 = vmatprep.subr.mxu0 0.0
    %614 = vmatpush1.xpose.msra.mxu0 0.0
    %615 = vmatprep.subr.mxu0 0.0
    %616 = vmatpush1.xpose.msra.mxu0 0.0
    %617 = vmatprep.subr.mxu0 0.0
    %618 = vmatpush1.xpose.msra.mxu0 0.0
    %619 = vmatprep.subr.mxu0 0.0
    %620 = vmatpush1.xpose.msra.mxu0 0.0
    %621 = vmatprep.subr.mxu0 0.0
    %622 = vmatpush1.xpose.msra.mxu0 0.0
    %623 = vmatprep.subr.mxu0 0.0
    %624 = vmatpush1.xpose.msra.mxu0 0.0
    %625 = vmatprep.subr.mxu0 0.0
    %626 = vmatpush1.xpose.msra.mxu0 0.0
    %627 = vmatprep.subr.mxu0 0.0
    %628 = vmatpush1.xpose.msra.mxu0 0.0
    %629 = vmatprep.subr.mxu0 0.0
    %630 = vmatpush1.xpose.msra.mxu0 0.0
    %631 = vmatprep.subr.mxu0 0.0
    %632 = vmatpush1.xpose.msra.mxu0 0.0
    %633 = vmatprep.subr.mxu0 0.0
    %634 = vmatpush1.xpose.msra.mxu0 0.0
    %635 = vmatprep.subr.mxu0 0.0
    %636 = vmatpush1.xpose.msra.mxu0 0.0
    %637 = vmatprep.subr.mxu0 0.0
    %638 = vmatpush1.xpose.msra.mxu0 0.0
    %639 = vmatprep.subr.mxu0 0.0
    %640 = vmatpush1.xpose.msra.mxu0 0.0
    %641 = vmatprep.subr.mxu0 0.0
    %642 = vmatpush1.xpose.msra.mxu0 0.0
    %643 = vmatprep.subr.mxu0 0.0
    %644 = vmatpush1.xpose.msra.mxu0 0.0
    %645 = vmatprep.subr.mxu0 0.0
    %646 = vmatpush1.xpose.msra.mxu0 0.0
    %647 = vmatprep.subr.mxu0 0.0
    %648 = vmatpush1.xpose.msra.mxu0 0.0
    %649 = vmatprep.subr.mxu0 0.0
    %650 = vmatpush1.xpose.msra.mxu0 0.0
    %651 = vmatprep.subr.mxu0 0.0
    %652 = vmatpush1.xpose.msra.mxu0 0.0
    %653 = vmatprep.subr.mxu0 0.0
    %654 = vmatpush1.xpose.msra.mxu0 0.0
    %655 = vmatprep.subr.mxu0 0.0
    %656 = vmatpush1.xpose.msra.mxu0 0.0
    %657 = vmatprep.subr.mxu0 0.0
    %658 = vmatpush1.xpose.msra.mxu0 0.0
    %659 = vmatprep.mubr.f32.mxu0 0.0
    %660 = vmatmul.mubr.f32.gmra.mrb[0].mxu0 %v591
    %v661 = vpop.f32.mrb[0].mxu0
    %v662 = vadd.f32 0.0, %v661
    %v663 = vpop.f32.mrb[0].mxu0
    %664 = vdwg.mxu0
    %v665 = vsel %vm585, %v662, -inf
    %vm666 = vcmask 64512
    %v667 = vsel %vm666, %v665, -inf
    %668 = vmax.xlane.f32.xlu0 %v667
    %v669 = vpop.xlane.xlu0 %668
    %v670 = vsub.f32 %v665, %v669
    %v671 = vmul.f32 %v670, 1.442695
    %v672 = vpow.pop %v671
    %v673 = vsel %vm666, %v672, 0.0
    %674 = vadd.xlane.f32.xlu0 %v673
    %v675 = vpop.xlane.xlu0 %674
    %v676 = vrcp.pop %v675
    %v677 = vmul.f32 %v672, %v676
    %678 = vrot.lane.b32.xlu0 %v572, 64
    %v679 = vpop.permute.xlu0 %678
    %v682 = vsel %vm666, %v677, 0
    %684 = vmatprep.subr.mxu0 0.0
    %685 = vmatpush1.msra.mxu0 %v679
    %686 = vmatprep.subr.mxu0 0.0
    %687 = vmatpush1.msra.mxu0 0.0
    %688 = vmatprep.subr.mxu0 0.0
    %689 = vmatpush1.msra.mxu0 0.0
    %690 = vmatprep.subr.mxu0 0.0
    %691 = vmatpush1.msra.mxu0 0.0
    %692 = vmatprep.subr.mxu0 0.0
    %693 = vmatpush1.msra.mxu0 0.0
    %694 = vmatprep.subr.mxu0 0.0
    %695 = vmatpush1.msra.mxu0 0.0
    %696 = vmatprep.subr.mxu0 0.0
    %697 = vmatpush1.msra.mxu0 0.0
    %698 = vmatprep.subr.mxu0 0.0
    %699 = vmatpush1.msra.mxu0 0.0
    %700 = vmatprep.subr.mxu0 0.0
    %701 = vmatpush1.msra.mxu0 0.0
    %702 = vmatprep.subr.mxu0 0.0
    %703 = vmatpush1.msra.mxu0 0.0
    %704 = vmatprep.subr.mxu0 0.0
    %705 = vmatpush1.msra.mxu0 0.0
    %706 = vmatprep.subr.mxu0 0.0
    %707 = vmatpush1.msra.mxu0 0.0
    %708 = vmatprep.subr.mxu0 0.0
    %709 = vmatpush1.msra.mxu0 0.0
    %710 = vmatprep.subr.mxu0 0.0
    %711 = vmatpush1.msra.mxu0 0.0
    %712 = vmatprep.subr.mxu0 0.0
    %713 = vmatpush1.msra.mxu0 0.0
    %714 = vmatprep.subr.mxu0 0.0
    %715 = vmatpush1.msra.mxu0 0.0
    %716 = vmatprep.subr.mxu0 0.0
    %717 = vmatpush1.msra.mxu0 0.0
    %718 = vmatprep.subr.mxu0 0.0
    %719 = vmatpush1.msra.mxu0 0.0
    %720 = vmatprep.subr.mxu0 0.0
    %721 = vmatpush1.msra.mxu0 0.0
    %722 = vmatprep.subr.mxu0 0.0
    %723 = vmatpush1.msra.mxu0 0.0
    %724 = vmatprep.subr.mxu0 0.0
    %725 = vmatpush1.msra.mxu0 0.0
    %726 = vmatprep.subr.mxu0 0.0
    %727 = vmatpush1.msra.mxu0 0.0
    %728 = vmatprep.subr.mxu0 0.0
    %729 = vmatpush1.msra.mxu0 0.0
    %730 = vmatprep.subr.mxu0 0.0
    %731 = vmatpush1.msra.mxu0 0.0
    %732 = vmatprep.subr.mxu0 0.0
    %733 = vmatpush1.msra.mxu0 0.0
    %734 = vmatprep.subr.mxu0 0.0
    %735 = vmatpush1.msra.mxu0 0.0
    %736 = vmatprep.subr.mxu0 0.0
    %737 = vmatpush1.msra.mxu0 0.0
    %738 = vmatprep.subr.mxu0 0.0
    %739 = vmatpush1.msra.mxu0 0.0
    %740 = vmatprep.subr.mxu0 0.0
    %741 = vmatpush1.msra.mxu0 0.0
    %742 = vmatprep.subr.mxu0 0.0
    %743 = vmatpush1.msra.mxu0 0.0
    %744 = vmatprep.subr.mxu0 0.0
    %745 = vmatpush1.msra.mxu0 0.0
    %746 = vmatprep.subr.mxu0 0.0
    %747 = vmatpush1.msra.mxu0 0.0
    %748 = vmatprep.mubr.f32.mxu0 0.0
    %749 = vmatmul.mubr.f32.gmra.mrb[0].mxu0 %v682
    %v750 = vpop.f32.mrb[0].mxu0
    %v751 = vadd.f32 0.0, %v750
    %v752 = vpop.f32.mrb[0].mxu0
    %753 = vdwg.mxu0
    %v754 = vmul.f32 %v578, 0.17677669
    %756 = vrot.lane.b32.xlu0 %v578, 96
    %v757 = vpop.permute.xlu0 %756
    %v759 = vsel %vm46, %v754, 0
    %v761 = vsel %vm46, %v757, 0
    %763 = vmatprep.subr.mxu0 0.0
    %764 = vmatpush1.xpose.msra.mxu0 %v761
    %765 = vmatprep.subr.mxu0 0.0
    %766 = vmatpush1.xpose.msra.mxu0 0.0
    %767 = vmatprep.subr.mxu0 0.0
    %768 = vmatpush1.xpose.msra.mxu0 0.0
    %769 = vmatprep.subr.mxu0 0.0
    %770 = vmatpush1.xpose.msra.mxu0 0.0
    %771 = vmatprep.subr.mxu0 0.0
    %772 = vmatpush1.xpose.msra.mxu0 0.0
    %773 = vmatprep.subr.mxu0 0.0
    %774 = vmatpush1.xpose.msra.mxu0 0.0
    %775 = vmatprep.subr.mxu0 0.0
    %776 = vmatpush1.xpose.msra.mxu0 0.0
    %777 = vmatprep.subr.mxu0 0.0
    %778 = vmatpush1.xpose.msra.mxu0 0.0
    %779 = vmatprep.subr.mxu0 0.0
    %780 = vmatpush1.xpose.msra.mxu0 0.0
    %781 = vmatprep.subr.mxu0 0.0
    %782 = vmatpush1.xpose.msra.mxu0 0.0
    %783 = vmatprep.subr.mxu0 0.0
    %784 = vmatpush1.xpose.msra.mxu0 0.0
    %785 = vmatprep.subr.mxu0 0.0
    %786 = vmatpush1.xpose.msra.mxu0 0.0
    %787 = vmatprep.subr.mxu0 0.0
    %788 = vmatpush1.xpose.msra.mxu0 0.0
    %789 = vmatprep.subr.mxu0 0.0
    %790 = vmatpush1.xpose.msra.mxu0 0.0
    %791 = vmatprep.subr.mxu0 0.0
    %792 = vmatpush1.xpose.msra.mxu0 0.0
    %793 = vmatprep.subr.mxu0 0.0
    %794 = vmatpush1.xpose.msra.mxu0 0.0
    %795 = vmatprep.subr.mxu0 0.0
    %796 = vmatpush1.xpose.msra.mxu0 0.0
    %797 = vmatprep.subr.mxu0 0.0
    %798 = vmatpush1.xpose.msra.mxu0 0.0
    %799 = vmatprep.subr.mxu0 0.0
    %800 = vmatpush1.xpose.msra.mxu0 0.0
    %801 = vmatprep.subr.mxu0 0.0
    %802 = vmatpush1.xpose.msra.mxu0 0.0
    %803 = vmatprep.subr.mxu0 0.0
    %804 = vmatpush1.xpose.msra.mxu0 0.0
    %805 = vmatprep.subr.mxu0 0.0
    %806 = vmatpush1.xpose.msra.mxu0 0.0
    %807 = vmatprep.subr.mxu0 0.0
    %808 = vmatpush1.xpose.msra.mxu0 0.0
    %809 = vmatprep.subr.mxu0 0.0
    %810 = vmatpush1.xpose.msra.mxu0 0.0
    %811 = vmatprep.subr.mxu0 0.0
    %812 = vmatpush1.xpose.msra.mxu0 0.0
    %813 = vmatprep.subr.mxu0 0.0
    %814 = vmatpush1.xpose.msra.mxu0 0.0
    %815 = vmatprep.subr.mxu0 0.0
    %816 = vmatpush1.xpose.msra.mxu0 0.0
    %817 = vmatprep.subr.mxu0 0.0
    %818 = vmatpush1.xpose.msra.mxu0 0.0
    %819 = vmatprep.subr.mxu0 0.0
    %820 = vmatpush1.xpose.msra.mxu0 0.0
    %821 = vmatprep.subr.mxu0 0.0
    %822 = vmatpush1.xpose.msra.mxu0 0.0
    %823 = vmatprep.subr.mxu0 0.0
    %824 = vmatpush1.xpose.msra.mxu0 0.0
    %825 = vmatprep.subr.mxu0 0.0
    %826 = vmatpush1.xpose.msra.mxu0 0.0
    %827 = vmatprep.mubr.f32.mxu0 0.0
    %828 = vmatmul.mubr.f32.gmra.mrb[0].mxu0 %v759
    %v829 = vpop.f32.mrb[0].mxu0
    %v830 = vadd.f32 0.0, %v829
    %v831 = vpop.f32.mrb[0].mxu0
    %832 = vdwg.mxu0
    %v833 = vsel %vm585, %v830, -inf
    %v834 = vsel %vm666, %v833, -inf
    %835 = vmax.xlane.f32.xlu0 %v834
    %v836 = vpop.xlane.xlu0 %835
    %v837 = vsub.f32 %v833, %v836
    %v838 = vmul.f32 %v837, 1.442695
    %v839 = vpow.pop %v838
    %v840 = vsel %vm666, %v839, 0.0
    %841 = vadd.xlane.f32.xlu0 %v840
    %v842 = vpop.xlane.xlu0 %841
    %v843 = vrcp.pop %v842
    %v844 = vmul.f32 %v839, %v843
    %845 = vrot.lane.b32.xlu0 %v578, 64
    %v846 = vpop.permute.xlu0 %845
    %v849 = vsel %vm666, %v844, 0
    %851 = vmatprep.subr.mxu0 0.0
    %852 = vmatpush1.msra.mxu0 %v846
    %853 = vmatprep.subr.mxu0 0.0
    %854 = vmatpush1.msra.mxu0 0.0
    %855 = vmatprep.subr.mxu0 0.0
    %856 = vmatpush1.msra.mxu0 0.0
    %857 = vmatprep.subr.mxu0 0.0
    %858 = vmatpush1.msra.mxu0 0.0
    %859 = vmatprep.subr.mxu0 0.0
    %860 = vmatpush1.msra.mxu0 0.0
    %861 = vmatprep.subr.mxu0 0.0
    %862 = vmatpush1.msra.mxu0 0.0
    %863 = vmatprep.subr.mxu0 0.0
    %864 = vmatpush1.msra.mxu0 0.0
    %865 = vmatprep.subr.mxu0 0.0
    %866 = vmatpush1.msra.mxu0 0.0
    %867 = vmatprep.subr.mxu0 0.0
    %868 = vmatpush1.msra.mxu0 0.0
    %869 = vmatprep.subr.mxu0 0.0
    %870 = vmatpush1.msra.mxu0 0.0
    %871 = vmatprep.subr.mxu0 0.0
    %872 = vmatpush1.msra.mxu0 0.0
    %873 = vmatprep.subr.mxu0 0.0
    %874 = vmatpush1.msra.mxu0 0.0
    %875 = vmatprep.subr.mxu0 0.0
    %876 = vmatpush1.msra.mxu0 0.0
    %877 = vmatprep.subr.mxu0 0.0
    %878 = vmatpush1.msra.mxu0 0.0
    %879 = vmatprep.subr.mxu0 0.0
    %880 = vmatpush1.msra.mxu0 0.0
    %881 = vmatprep.subr.mxu0 0.0
    %882 = vmatpush1.msra.mxu0 0.0
    %883 = vmatprep.subr.mxu0 0.0
    %884 = vmatpush1.msra.mxu0 0.0
    %885 = vmatprep.subr.mxu0 0.0
    %886 = vmatpush1.msra.mxu0 0.0
    %887 = vmatprep.subr.mxu0 0.0
    %888 = vmatpush1.msra.mxu0 0.0
    %889 = vmatprep.subr.mxu0 0.0
    %890 = vmatpush1.msra.mxu0 0.0
    %891 = vmatprep.subr.mxu0 0.0
    %892 = vmatpush1.msra.mxu0 0.0
    %893 = vmatprep.subr.mxu0 0.0
    %894 = vmatpush1.msra.mxu0 0.0
    %895 = vmatprep.subr.mxu0 0.0
    %896 = vmatpush1.msra.mxu0 0.0
    %897 = vmatprep.subr.mxu0 0.0
    %898 = vmatpush1.msra.mxu0 0.0
    %899 = vmatprep.subr.mxu0 0.0
    %900 = vmatpush1.msra.mxu0 0.0
    %901 = vmatprep.subr.mxu0 0.0
    %902 = vmatpush1.msra.mxu0 0.0
    %903 = vmatprep.subr.mxu0 0.0
    %904 = vmatpush1.msra.mxu0 0.0
    %905 = vmatprep.subr.mxu0 0.0
    %906 = vmatpush1.msra.mxu0 0.0
    %907 = vmatprep.subr.mxu0 0.0
    %908 = vmatpush1.msra.mxu0 0.0
    %909 = vmatprep.subr.mxu0 0.0
    %910 = vmatpush1.msra.mxu0 0.0
    %911 = vmatprep.subr.mxu0 0.0
    %912 = vmatpush1.msra.mxu0 0.0
    %913 = vmatprep.subr.mxu0 0.0
    %914 = vmatpush1.msra.mxu0 0.0
    %915 = vmatprep.mubr.f32.mxu0 0.0
    %916 = vmatmul.mubr.f32.gmra.mrb[0].mxu0 %v849
    %v917 = vpop.f32.mrb[0].mxu0
    %v918 = vadd.f32 0.0, %v917
    %v919 = vpop.f32.mrb[0].mxu0
    %920 = vdwg.mxu0
    %923 = vrot.lane.b32.xlu0 %v751, 96
    %v924 = vpop.permute.xlu0 %923
    %925 = vrot.lane.b32.xlu0 %v918, 96
    %v926 = vpop.permute.xlu0 %925
    %vm929 = vcmask 785408
    %v930 = vsel %vm929, %v572, %v924
    %v931 = vsel %vm929, %v578, %v926
    %932 = vst [vmem:[#allocation7] sm:$0xff] %v930
    %933 = vst [vmem:[#allocation7 + $0x8] sm:$0xff] %v931
    // Predicated region
    $region18: #{tpu_custom_call.1} parent=1 // pred_check
      _
    $region19: #{tpu_custom_call.1} parent=1 // pred_check_branch
      %935 = sbr.rel (0) target = $region21
    $region20: #{tpu_custom_call.1} parent=1 // pred_region
      %s937 = ssub.s32 256, 256
      %938 = vsyncadd [#allocation4], %s937
      %s939 = sshll.u32 [#allocation7], 4
      %s940 = int_to_ptr.vmem [resolvable:$true] %s939
      %945 = dma.vmem_to_hbm [thread:$0]  %s940, 256, %s2, [#allocation4], 128, 128, 8
    $region21: #{tpu_custom_call.1} parent=1 // pred_fallthru
      _
    // Predicated region
    $region22: #{tpu_custom_call.1} parent=1 // pred_check
      _
    $region23: #{tpu_custom_call.1} parent=1 // pred_check_branch
      %947 = sbr.rel (0) target = $region25
    $region24: #{tpu_custom_call.1} parent=1 // pred_region
      %948 = dma.done [#allocation4], 256
    $region25: #{tpu_custom_call.1} parent=1 // pred_fallthru
      _
    %949 = vsyncpa [#allocation3], 1
    %950 = vsyncpa [#allocation6], 1
    %951 = vsyncpa [#allocation4], 1

</llo_original>
